<compile_context>
chip_gen: v6e
topology: v6e:2x2x1
jax: 0.10.0
libtpu: 0.0.40
codegen_flags: <defaults>
</compile_context>

<pallas_src>
import functools

import jax
import jax.numpy as jnp
from jax.experimental import pallas as pl
from jax.experimental.pallas import tpu as pltpu

MARGIN = 2.0
EMBED_DIM = 20     # self.embedding_dim
N_ENTITY = 32      # synthetic sizes (read_data would set these from files)
N_RELATION = 8
N_TRAIN = 16
BATCH = 8
N_STEPS = 4        # number of training batches fused into one launch


def transe_fused_kernel(table_ref, idx_ref, loss_ref):
    """One grid step == one training batch.

    table_ref : (N_ENTITY + N_RELATION + N_TRAIN, D) f32, resident across grid
    idx_ref   : (8*B, 1) int32, rows = [h, hn, t, tn, r, rn, err, sel] x B,
                already offset into the concatenated table
    loss_ref  : (1, 1) f32, this batch's scalar loss
    """
    table = table_ref[...]                       # (R, D) f32
    idx = idx_ref[...]                           # (8B, 1) int32
    n_rows = table.shape[0]
    m = idx.shape[0]
    b = m // 8

    # ---- all 8 gathers as ONE one-hot matmul on the MXU -------------------
    iota = jax.lax.broadcasted_iota(jnp.int32, (m, n_rows), 1)
    onehot = (iota == idx).astype(jnp.float32)   # (8B, R)
    g = jnp.dot(onehot, table,
                preferred_element_type=jnp.float32,
                precision=jax.lax.Precision.HIGHEST)   # exact f32 gather

    # groups of b rows: [h, hn, t, tn, r, rn, err, sel]
    heads = g[0:2 * b]          # (2B, D)  = [ht ; htn]
    tails = g[2 * b:4 * b]      # (2B, D)  = [tt ; ttn]
    rels = g[4 * b:6 * b]       # (2B, D)  = [rt ; rtn]
    err = g[6 * b:7 * b, 0:1]   # (B, 1)   error(selected_error_idx)
    sel = g[7 * b:8 * b, 0:1]   # (B, 1)   error(selected_error)

    # ---- score_func: sum(|h + r - t|, dim=1), pos & neg in one pass -------
    score = jnp.sum(jnp.abs(heads + rels - tails), axis=1, keepdims=True)
    pos = score[0:b]            # (B, 1)
    neg = score[b:2 * b]        # (B, 1)

    # ---- loss_func ---------------------------------------------------------
    loss_error = 0.1 * jnp.mean(sel * sel)
    loss_pos = jnp.mean(pos * pos)
    # torch: margin*ones(B,1) - neg_score(B,) - error(B,1) -> (B,B) broadcast
    # with [i,j] = a_j - e_i.  Expanded exactly (avoids the (B,B) relayout):
    #   mean((a_j - e_i)^2) = mean(a^2) + mean(e^2) - 2*mean(a)*mean(e)
    a = MARGIN - neg
    loss_neg = (jnp.mean(a * a) + jnp.mean(err * err)
                - 2.0 * jnp.mean(a) * jnp.mean(err))

    total = loss_error + loss_pos + loss_neg
    loss_ref[...] = jnp.broadcast_to(total, (1, 1)).astype(jnp.float32)


def make_transe_table(entity_w, relation_w, error_w):
    """One-time prep: concat [entity ; relation ; error-as-col0] as f32."""
    ent = entity_w.astype(jnp.float32)
    rel = relation_w.astype(jnp.float32)
    err = error_w.astype(jnp.float32).reshape(-1, 1)
    d = ent.shape[1]
    err_rows = jnp.pad(err, ((0, 0), (0, d - 1)))   # error value in column 0
    return jnp.concatenate([ent, rel, err_rows], axis=0)


def _pack_indices(p_idx, n_idx, sel_err_idx, sel_err, n_entity, n_relation):
    """(S,B,3),(S,B,3),(S,B),(S,B) -> (S, 8*B, 1) int32 rows into the table."""
    off_r = n_entity
    off_e = n_entity + n_relation
    h, t, r = p_idx[..., 0], p_idx[..., 1], p_idx[..., 2]
    hn, tn, rn = n_idx[..., 0], n_idx[..., 1], n_idx[..., 2]
    groups = jnp.stack(
        [h, hn, t, tn, r + off_r, rn + off_r,
         sel_err_idx + off_e, sel_err + off_e], axis=-2)       # (S, 8, B)
    s, _, b = groups.shape
    return groups.astype(jnp.int32).reshape(s, 8 * b, 1)


@functools.partial(jax.jit, static_argnames=("n_entity", "n_relation"))
def transe_forward_steps(table, p_idx, n_idx, selected_error_idx,
                         selected_error, *, n_entity=N_ENTITY,
                         n_relation=N_RELATION):
    """Fused forward for S training batches in ONE pallas_call.

    p_idx, n_idx                      : (S, B, 3) int
    selected_error_idx, selected_error: (S, B) int
    Returns (S,) f32 per-batch losses (same semantics as S forward() calls).
    """
    s, b = selected_error_idx.shape
    n_rows, d = table.shape
    idx = _pack_indices(p_idx, n_idx, selected_error_idx, selected_error,
                        n_entity, n_relation)                   # (S, 8B, 1)

    out = pl.pallas_call(
        transe_fused_kernel,
        out_shape=jax.ShapeDtypeStruct((s, 1, 1), jnp.float32),
        grid=(s,),
        in_specs=[
            pl.BlockSpec((n_rows, d), lambda i: (0, 0)),        # resident table
            pl.BlockSpec((None, 8 * b, 1), lambda i: (i, 0, 0)),
        ],
        out_specs=pl.BlockSpec((None, 1, 1), lambda i: (i, 0, 0)),
        compiler_params=pltpu.CompilerParams(
            dimension_semantics=("parallel",)),                 # megacore on v7x
    )(table, idx)
    return out[:, 0, 0]


def transe_forward(table, p_idx, n_idx, selected_error_idx, selected_error,
                   n_entity=N_ENTITY, n_relation=N_RELATION):
    """Drop-in single-batch forward (matches the PyTorch forward signature)."""
    losses = transe_forward_steps(
        table, p_idx[None], n_idx[None], selected_error_idx[None],
        selected_error[None], n_entity=n_entity, n_relation=n_relation)
    return losses[0]


def transe_forward_ref(entity_w, relation_w, error_w, p_idx, n_idx,
                       selected_error_idx, selected_error):
    """Pure-JAX reference mirroring the PyTorch forward exactly (one batch)."""
    h, t, r = p_idx[:, 0], p_idx[:, 1], p_idx[:, 2]
    hn, tn, rn = n_idx[:, 0], n_idx[:, 1], n_idx[:, 2]
    ht, tt, rt = entity_w[h], entity_w[t], relation_w[r]
    htn, ttn, rtn = entity_w[hn], entity_w[tn], relation_w[rn]
    err = error_w[selected_error_idx]          # (B, 1)
    sel_err = error_w[selected_error]          # (B, 1)
    pos = jnp.sum(jnp.abs(ht + rt - tt), axis=1)    # (B,)
    neg = jnp.sum(jnp.abs(htn + rtn - ttn), axis=1)  # (B,)
    right_neg = MARGIN * jnp.ones((err.shape[0], 1), jnp.float32) - neg - err
    return (0.1 * jnp.mean(sel_err ** 2) + jnp.mean(pos ** 2)
            + jnp.mean(right_neg ** 2))


if __name__ == "__main__":
    key = jax.random.PRNGKey(0)
    ks = jax.random.split(key, 12)
    bound = 1.0 / (EMBED_DIM ** 0.5)

    # init_weights(): uniform(-1/sqrt(d), 1/sqrt(d)) for entity/relation,
    #                 uniform(0, 1/sqrt(d)) for error.
    entity_w = jax.random.uniform(ks[0], (N_ENTITY, EMBED_DIM), jnp.float32,
                                  -bound, bound)
    relation_w = jax.random.uniform(ks[1], (N_RELATION, EMBED_DIM), jnp.float32,
                                    -bound, bound)
    error_w = jax.random.uniform(ks[2], (N_TRAIN, 1), jnp.float32, 0.0, bound)

    # One-time table prep (hoisted out of the training step).
    table = make_transe_table(entity_w, relation_w, error_w)

    # S batches of (head, tail, relation) triples, per the forward's slicing.
    S, B = N_STEPS, BATCH
    p_idx = jnp.stack([
        jax.random.randint(ks[3], (S, B), 0, N_ENTITY),
        jax.random.randint(ks[4], (S, B), 0, N_ENTITY),
        jax.random.randint(ks[5], (S, B), 0, N_RELATION),
    ], axis=-1).astype(jnp.int32)
    n_idx = jnp.stack([
        jax.random.randint(ks[6], (S, B), 0, N_ENTITY),
        jax.random.randint(ks[7], (S, B), 0, N_ENTITY),
        jax.random.randint(ks[8], (S, B), 0, N_RELATION),
    ], axis=-1).astype(jnp.int32)
    selected_error_idx = jax.random.randint(ks[9], (S, B), 0, N_TRAIN).astype(jnp.int32)
    selected_error = jax.random.randint(ks[10], (S, B), 0, N_TRAIN).astype(jnp.int32)

    # Batched launch: S forward passes in one pallas_call.
    losses = transe_forward_steps(table, p_idx, n_idx, selected_error_idx,
                                  selected_error)
    jax.block_until_ready(losses)

    ref = jnp.stack([
        transe_forward_ref(entity_w, relation_w, error_w, p_idx[i], n_idx[i],
                           selected_error_idx[i], selected_error[i])
        for i in range(S)
    ])
    if not jnp.allclose(losses, ref, rtol=1e-5, atol=1e-5):
        raise AssertionError(f"batched mismatch: pallas={losses} ref={ref}")

    # Single-batch path (module-equivalent forward signature).
    loss0 = transe_forward(table, p_idx[0], n_idx[0], selected_error_idx[0],
                           selected_error[0])
    jax.block_until_ready(loss0)
    if not jnp.allclose(loss0, ref[0], rtol=1e-5, atol=1e-5):
        raise AssertionError(f"single mismatch: pallas={loss0} ref={ref[0]}")

    print("KERNEL_OK")
</pallas_src>

<mosaic_0001>
module attributes {stable_mosaic.version = 11 : i64} {
  func.func @transe_fused_kernel(%arg0: i32, %arg1: memref<56x20xf32, #tpu.memory_space<vmem>>, %arg2: memref<1x64x1xi32, #tpu.memory_space<vmem>>, %arg3: memref<1x1x1xf32, #tpu.memory_space<vmem>>) attributes {dimension_semantics = [#tpu.dimension_semantics<parallel>], iteration_bounds = array<i64: 4>, scalar_prefetch = 0 : i64, scratch_operands = 0 : i64, tpu.core_type = #tpu.core_type<tc>, window_params = [{pipeline_mode = #tpu.pipeline_mode<synchronous>, transform_indices = @transform_0, window_bounds = array<i64: 56, 20>}, {transform_indices = @transform_1, window_bounds = array<i64: 1, 64, 1>}, {transform_indices = @transform_2, window_bounds = array<i64: 1, 1, 1>}]} {
    %c0 = arith.constant 0 : index
    %c0_0 = arith.constant 0 : index
    %0 = vector.load %arg1[%c0, %c0_0] : memref<56x20xf32, #tpu.memory_space<vmem>>, vector<56x20xf32>
    %c0_1 = arith.constant 0 : index
    %c0_2 = arith.constant 0 : index
    %c0_3 = arith.constant 0 : index
    %1 = vector.load %arg2[%c0_1, %c0_2, %c0_3] : memref<1x64x1xi32, #tpu.memory_space<vmem>>, vector<1x64x1xi32>
    %2 = vector.shape_cast %1 : vector<1x64x1xi32> to vector<64x1xi32>
    %3 = tpu.iota {dimensions = array<i32: 1>} : vector<64x56xi32>
    %4 = vector.broadcast %2 : vector<64x1xi32> to vector<64x56xi32>
    %5 = arith.cmpi eq, %3, %4 : vector<64x56xi32>
    %6 = arith.extui %5 : vector<64x56xi1> to vector<64x56xi32>
    %7 = arith.sitofp %6 : vector<64x56xi32> to vector<64x56xf32>
    %cst = arith.constant dense<0.000000e+00> : vector<64x20xf32>
    %8 = tpu.matmul %7, %0, %cst {dimension_numbers = #tpu.dot_dimension_numbers<[1], [0], [0], [1], [0, 0, 1, 1], [], []>, precision = #tpu.contract_precision<fp32>} : vector<64x56xf32>, vector<56x20xf32>, vector<64x20xf32> -> vector<64x20xf32>
    %9 = vector.extract_strided_slice %8 {offsets = [0, 0], sizes = [16, 20], strides = [1, 1]} : vector<64x20xf32> to vector<16x20xf32>
    %10 = vector.extract_strided_slice %8 {offsets = [16, 0], sizes = [16, 20], strides = [1, 1]} : vector<64x20xf32> to vector<16x20xf32>
    %11 = vector.extract_strided_slice %8 {offsets = [32, 0], sizes = [16, 20], strides = [1, 1]} : vector<64x20xf32> to vector<16x20xf32>
    %12 = vector.extract_strided_slice %8 {offsets = [48, 0], sizes = [8, 1], strides = [1, 1]} : vector<64x20xf32> to vector<8x1xf32>
    %13 = vector.extract_strided_slice %8 {offsets = [56, 0], sizes = [8, 1], strides = [1, 1]} : vector<64x20xf32> to vector<8x1xf32>
    %14 = arith.addf %9, %11 : vector<16x20xf32>
    %15 = arith.subf %14, %10 : vector<16x20xf32>
    %16 = math.absf %15 : vector<16x20xf32>
    %cst_4 = arith.constant dense<0.000000e+00> : vector<16xf32>
    %17 = vector.multi_reduction <add>, %16, %cst_4 [1] : vector<16x20xf32> to vector<16xf32>
    %18 = vector.shape_cast %17 : vector<16xf32> to vector<16x1xf32>
    %19 = vector.extract_strided_slice %18 {offsets = [0, 0], sizes = [8, 1], strides = [1, 1]} : vector<16x1xf32> to vector<8x1xf32>
    %20 = vector.extract_strided_slice %18 {offsets = [8, 0], sizes = [8, 1], strides = [1, 1]} : vector<16x1xf32> to vector<8x1xf32>
    %21 = arith.mulf %13, %13 : vector<8x1xf32>
    %22 = vector.shape_cast %21 : vector<8x1xf32> to vector<1x8x1xf32>
    %cst_5 = arith.constant dense<0.000000e+00> : vector<1xf32>
    %23 = vector.multi_reduction <add>, %22, %cst_5 [1, 2] : vector<1x8x1xf32> to vector<1xf32>
    %24 = vector.shape_cast %23 : vector<1xf32> to vector<1x1x1xf32>
    %25 = vector.extract %24[0, 0, 0] : f32 from vector<1x1x1xf32>
    %cst_6 = arith.constant 8.000000e+00 : f32
    %26 = arith.divf %25, %cst_6 : f32
    %cst_7 = arith.constant 1.000000e-01 : f32
    %27 = arith.mulf %cst_7, %26 : f32
    %28 = arith.mulf %19, %19 : vector<8x1xf32>
    %29 = vector.shape_cast %28 : vector<8x1xf32> to vector<1x8x1xf32>
    %cst_8 = arith.constant dense<0.000000e+00> : vector<1xf32>
    %30 = vector.multi_reduction <add>, %29, %cst_8 [1, 2] : vector<1x8x1xf32> to vector<1xf32>
    %31 = vector.shape_cast %30 : vector<1xf32> to vector<1x1x1xf32>
    %32 = vector.extract %31[0, 0, 0] : f32 from vector<1x1x1xf32>
    %cst_9 = arith.constant 8.000000e+00 : f32
    %33 = arith.divf %32, %cst_9 : f32
    %cst_10 = arith.constant 2.000000e+00 : f32
    %34 = vector.broadcast %cst_10 : f32 to vector<8x1xf32>
    %35 = arith.subf %34, %20 : vector<8x1xf32>
    %36 = arith.mulf %35, %35 : vector<8x1xf32>
    %37 = vector.shape_cast %36 : vector<8x1xf32> to vector<1x8x1xf32>
    %cst_11 = arith.constant dense<0.000000e+00> : vector<1xf32>
    %38 = vector.multi_reduction <add>, %37, %cst_11 [1, 2] : vector<1x8x1xf32> to vector<1xf32>
    %39 = vector.shape_cast %38 : vector<1xf32> to vector<1x1x1xf32>
    %40 = vector.extract %39[0, 0, 0] : f32 from vector<1x1x1xf32>
    %cst_12 = arith.constant 8.000000e+00 : f32
    %41 = arith.divf %40, %cst_12 : f32
    %42 = arith.mulf %12, %12 : vector<8x1xf32>
    %43 = vector.shape_cast %42 : vector<8x1xf32> to vector<1x8x1xf32>
    %cst_13 = arith.constant dense<0.000000e+00> : vector<1xf32>
    %44 = vector.multi_reduction <add>, %43, %cst_13 [1, 2] : vector<1x8x1xf32> to vector<1xf32>
    %45 = vector.shape_cast %44 : vector<1xf32> to vector<1x1x1xf32>
    %46 = vector.extract %45[0, 0, 0] : f32 from vector<1x1x1xf32>
    %cst_14 = arith.constant 8.000000e+00 : f32
    %47 = arith.divf %46, %cst_14 : f32
    %48 = arith.addf %41, %47 : f32
    %49 = vector.shape_cast %35 : vector<8x1xf32> to vector<1x8x1xf32>
    %cst_15 = arith.constant dense<0.000000e+00> : vector<1xf32>
    %50 = vector.multi_reduction <add>, %49, %cst_15 [1, 2] : vector<1x8x1xf32> to vector<1xf32>
    %51 = vector.shape_cast %50 : vector<1xf32> to vector<1x1x1xf32>
    %52 = vector.extract %51[0, 0, 0] : f32 from vector<1x1x1xf32>
    %cst_16 = arith.constant 8.000000e+00 : f32
    %53 = arith.divf %52, %cst_16 : f32
    %cst_17 = arith.constant 2.000000e+00 : f32
    %54 = arith.mulf %cst_17, %53 : f32
    %55 = vector.shape_cast %12 : vector<8x1xf32> to vector<1x8x1xf32>
    %cst_18 = arith.constant dense<0.000000e+00> : vector<1xf32>
    %56 = vector.multi_reduction <add>, %55, %cst_18 [1, 2] : vector<1x8x1xf32> to vector<1xf32>
    %57 = vector.shape_cast %56 : vector<1xf32> to vector<1x1x1xf32>
    %58 = vector.extract %57[0, 0, 0] : f32 from vector<1x1x1xf32>
    %cst_19 = arith.constant 8.000000e+00 : f32
    %59 = arith.divf %58, %cst_19 : f32
    %60 = arith.mulf %54, %59 : f32
    %61 = arith.subf %48, %60 : f32
    %62 = arith.addf %27, %33 : f32
    %63 = arith.addf %62, %61 : f32
    %64 = vector.broadcast %63 : f32 to vector<1x1xf32>
    %c0_20 = arith.constant 0 : index
    %c0_21 = arith.constant 0 : index
    %c0_22 = arith.constant 0 : index
    %65 = vector.load %arg3[%c0_20, %c0_21, %c0_22] : memref<1x1x1xf32, #tpu.memory_space<vmem>>, vector<1x1x1xf32>
    %66 = vector.shape_cast %65 : vector<1x1x1xf32> to vector<1x1xf32>
    %67 = vector.shape_cast %64 : vector<1x1xf32> to vector<1x1x1xf32>
    tpu.vector_store %arg3[%c0_20, %c0_21, %c0_22], %67 {strides = array<i32>} : memref<1x1x1xf32, #tpu.memory_space<vmem>>, vector<1x1x1xf32>,
    return
  }
  func.func @transform_0(%arg0: i32) -> (i32, i32) {
    %c0_i32 = arith.constant 0 : i32
    %c0_i32_0 = arith.constant 0 : i32
    %c0_i32_1 = arith.constant 0 : i32
    return %c0_i32, %c0_i32_0 : i32, i32
  }
  func.func @transform_1(%arg0: i32) -> (i32, i32, i32) {
    %c0_i32 = arith.constant 0 : i32
    %c0_i32_0 = arith.constant 0 : i32
    %c0_i32_1 = arith.constant 0 : i32
    return %arg0, %c0_i32, %c0_i32_0 : i32, i32, i32
  }
  func.func @transform_2(%arg0: i32) -> (i32, i32, i32) {
    %c0_i32 = arith.constant 0 : i32
    %c0_i32_0 = arith.constant 0 : i32
    %c0_i32_1 = arith.constant 0 : i32
    return %arg0, %c0_i32, %c0_i32_0 : i32, i32, i32
  }
}

</mosaic_0001>

<llo_original>
// kernel: transe_forward_steps.1
$region0: #{transe_forward_steps.1}
  #allocation0 [shape = 'u32[]', space=smem, size = 0x4, offset = 0x4, fixed_abs, tag = 'smem constant byte address 0x4 - core index']
  #allocation1 [shape = 'u32[144,128]{1,0:T(1,128)}', space=vmem, size = 0x12000, scoped, tag = 'internal scratch']
  %s0 = inlined_call_operand.vmem [shape: f32[56,20], index: 0, kind: input, shape index: {}]
  %s1 = inlined_call_operand.vmem [shape: s32[4,64,1], index: 1, kind: input, shape index: {}]
  %s2 = inlined_call_operand.vmem [shape: f32[4,1,1], index: 2, kind: output, shape index: {}]
  %s3 = sld [smem:[#allocation0]]
  $region41: #{transe_forward_steps.1} parent=0
    _
  %s5 = ssub.s32 1, %s3
  %s6 = scalar_select 0, %s5, %s3
  loop: start=0, step=1, limit=6
  $region2: #{transe_forward_steps.1} parent=0 // loop_pre_header
    _
  $region3: #{transe_forward_steps.1} parent=0 // loop_header
    %s8 = sphi 0, %s12
    %p9 = scmp.ge.s32.totalorder %s8, 6
    %s16 = sphi 0, %s16
    %s18 = sphi 0, %s16
    %s19 = sphi 0, %s18
    %s33 = sphi 0, %s19
    %s39 = sphi 0, %s41
    %s42 = sphi 0, %s39
    %s43 = sphi 0, %s42
    %s59 = sphi 0, %s43
    %s65 = sphi 0, %s67
    %s68 = sphi 0, %s65
    %s69 = sphi 0, %s68
    %s85 = sphi 0, %s69
  $region4: #{transe_forward_steps.1} parent=0 // loop_header_branch
    %11 = sbr.rel (%p9) target = $region8
  $region5: #{transe_forward_steps.1} parent=0 // loop_body
    %s13 = ssub.s32 %s8, 1
    %s14 = ssub.s32 %s8, 2
    %s15 = sadd.s32 %s8, 1
    %s17 = sadd.s32 %s16, 1
    %p20 = scmp.eq.s32.totalorder %s8, 3
    %p21 = scmp.ne.s32.totalorder %s16, %s18
    %p22 = scmp.eq.s32.totalorder %s8, 0
    %p23 = por %p21, %p22
    %p24 = scmp.ne.s32.totalorder %s16, %s18
    %p25 = scmp.eq.s32.totalorder %s13, 3
    %p26 = por %p24, %p25
    %p27 = scmp.ne.s32.totalorder %s18, %s19
    %p28 = scmp.eq.s32.totalorder %s13, 0
    %p29 = por %p27, %p28
    %p30 = scmp.ne.s32.totalorder %s18, %s19
    %p31 = scmp.eq.s32.totalorder %s14, 3
    %p32 = por %p30, %p31
    %p34 = scmp.ne.s32.totalorder %s19, %s33
    %p35 = scmp.eq.s32.totalorder %s14, 0
    %p36 = por %p34, %p35
    %s37 = ssub.s32 %s8, %s15
    %p38 = scmp.eq.s32.totalorder %s37, 0
    %s40 = sadd.s32 %s39, 1
    %s41 = scalar_select %p38, %s39, %s40
    %p44 = pneg %p38
    %p45 = scmp.eq.s32.totalorder %s8, 3
    %p46 = por %p44, %p45
    %p47 = scmp.ne.s32.totalorder %s39, %s42
    %p48 = scmp.eq.s32.totalorder %s8, 0
    %p49 = por %p47, %p48
    %p50 = scmp.ne.s32.totalorder %s39, %s42
    %p51 = scmp.eq.s32.totalorder %s13, 3
    %p52 = por %p50, %p51
    %p53 = scmp.ne.s32.totalorder %s42, %s43
    %p54 = scmp.eq.s32.totalorder %s13, 0
    %p55 = por %p53, %p54
    %p56 = scmp.ne.s32.totalorder %s42, %s43
    %p57 = scmp.eq.s32.totalorder %s14, 3
    %p58 = por %p56, %p57
    %p60 = scmp.ne.s32.totalorder %s43, %s59
    %p61 = scmp.eq.s32.totalorder %s14, 0
    %p62 = por %p60, %p61
    %s63 = ssub.s32 %s8, %s15
    %p64 = scmp.eq.s32.totalorder %s63, 0
    %s66 = sadd.s32 %s65, 1
    %s67 = scalar_select %p64, %s65, %s66
    %p70 = pneg %p64
    %p71 = scmp.eq.s32.totalorder %s8, 3
    %p72 = por %p70, %p71
    %p73 = scmp.ne.s32.totalorder %s65, %s68
    %p74 = scmp.eq.s32.totalorder %s8, 0
    %p75 = por %p73, %p74
    %p76 = scmp.ne.s32.totalorder %s65, %s68
    %p77 = scmp.eq.s32.totalorder %s13, 3
    %p78 = por %p76, %p77
    %p79 = scmp.ne.s32.totalorder %s68, %s69
    %p80 = scmp.eq.s32.totalorder %s13, 0
    %p81 = por %p79, %p80
    %p82 = scmp.ne.s32.totalorder %s68, %s69
    %p83 = scmp.eq.s32.totalorder %s14, 3
    %p84 = por %p82, %p83
    %p86 = scmp.ne.s32.totalorder %s69, %s85
    %p87 = scmp.eq.s32.totalorder %s14, 0
    %p88 = por %p86, %p87
    %p89 = scmp.le.s32.totalorder 1, %s8
    %p90 = scmp.lt.s32.totalorder %s8, 5
    %p91 = pnand %p89, %p90
    %p92 = pneg %p91
    // Predicated region
    $region9: #{transe_forward_steps.1} parent=5 // pred_check
      _
    $region10: #{transe_forward_steps.1} parent=5 // pred_check_branch
      %94 = sbr.rel (%p91) target = $region12
    $region11: #{transe_forward_steps.1} parent=5 // pred_region
      %s95 = ssub.s32 %s8, 1
      // Predicated region
      $region13: #{transe_forward_steps.1} parent=11 // pred_check
        %p96 = pneg %p29
      $region14: #{transe_forward_steps.1} parent=11 // pred_check_branch
        %98 = sbr.rel (%p96) target = $region16
      $region15: #{transe_forward_steps.1} parent=11 // pred_region
        _
      $region16: #{transe_forward_steps.1} parent=11 // pred_fallthru
        _
    $region12: #{transe_forward_steps.1} parent=5 // pred_fallthru
      _
    %p99 = scmp.lt.s32.totalorder %s8, 4
    // Predicated region
    $region17: #{transe_forward_steps.1} parent=5 // pred_check
      %p100 = pneg %p99
    $region18: #{transe_forward_steps.1} parent=5 // pred_check_branch
      %102 = sbr.rel (%p100) target = $region20
    $region19: #{transe_forward_steps.1} parent=5 // pred_region
      // Predicated region
      $region21: #{transe_forward_steps.1} parent=19 // pred_check
        %p103 = pneg %p49
      $region22: #{transe_forward_steps.1} parent=19 // pred_check_branch
        %105 = sbr.rel (%p103) target = $region24
      $region23: #{transe_forward_steps.1} parent=19 // pred_region
        %p106 = scmp.lt.s32.totalorder %s8, 3
        %s107 = scalar_select %p106, %s8, 3
        %s108 = smul.addr %s107, 8
        %s109 = smul.addr %s108, 8
        %s110 = scalar_lea.vmem %s1, %s109
      $region24: #{transe_forward_steps.1} parent=19 // pred_fallthru
        _
    $region20: #{transe_forward_steps.1} parent=5 // pred_fallthru
      _
    %p111 = scmp.le.s32.totalorder 1, %s8
    %p112 = scmp.lt.s32.totalorder %s8, 5
    %p113 = pnand %p111, %p112
    %p114 = pneg %p113
    // Predicated region
    $region25: #{transe_forward_steps.1} parent=5 // pred_check
      _
    $region26: #{transe_forward_steps.1} parent=5 // pred_check_branch
      %116 = sbr.rel (%p113) target = $region28
    $region27: #{transe_forward_steps.1} parent=5 // pred_region
      %s117 = ssub.s32 %s8, 1
      %p118 = pneg %p29
      %p119 = pneg %p26
      %p120 = scmp.lt.s32.totalorder %s13, 3
      %s121 = scalar_select %p120, %s13, 3
      %s122 = smul.addr %s121, 8
      %s123 = smul.addr %s122, 8
      %s124 = scalar_lea.vmem %s1, %s123
      %p125 = pneg %p55
      %p126 = pneg %p52
      %p127 = pneg %p81
      %p128 = pneg %p78
      %p129 = scmp.lt.s32.totalorder %s13, 3
      %s130 = scalar_select %p129, %s13, 3
      %s131 = scalar_lea.vmem %s2, %s130
      %p132 = scmp.lt.s32.totalorder %s13, 3
      %s133 = scalar_select %p132, %s13, 3
      %s134 = smul.addr %s133, 8
      %s135 = smul.addr %s134, 8
      %s136 = scalar_lea.vmem %s1, %s135
      %p137 = scmp.lt.s32.totalorder %s13, 3
      %s138 = scalar_select %p137, %s13, 3
      %s139 = scalar_lea.vmem %s2, %s138
      %v140 = vld [vmem:[%s0] sm:$0xff]
      %v141 = vld [vmem:[%s0 + $0x8] sm:$0xff]
      %v142 = vld [vmem:[%s0 + $0x10] sm:$0xff]
      %v143 = vld [vmem:[%s0 + $0x18] sm:$0xff]
      %v144 = vld [vmem:[%s0 + $0x20] sm:$0xff]
      %v145 = vld [vmem:[%s0 + $0x28] sm:$0xff]
      %v146 = vld [vmem:[%s0 + $0x30] sm:$0xff]
      %v147 = vld [vmem:[%s136] sm:$0xff]
      %v148 = vld [vmem:[%s136 + $0x8] sm:$0xff]
      %v149 = vld [vmem:[%s136 + $0x10] sm:$0xff]
      %v150 = vld [vmem:[%s136 + $0x18] sm:$0xff]
      %v151 = vld [vmem:[%s136 + $0x20] sm:$0xff]
      %v152 = vld [vmem:[%s136 + $0x28] sm:$0xff]
      %v153 = vld [vmem:[%s136 + $0x30] sm:$0xff]
      %v154 = vld [vmem:[%s136 + $0x38] sm:$0xff]
      %v155 = vlaneseq
      %v156 = vand.u32 %v155, 127
      %157 = vset.pattern.permute.xlu0 0
      %158 = vperm.xlu0 %157, %v147
      %v159 = vpop.permute.xlu0 %158
      %160 = vset.pattern.permute.xlu0 0
      %161 = vperm.xlu0 %160, %v148
      %v162 = vpop.permute.xlu0 %161
      %163 = vset.pattern.permute.xlu0 0
      %164 = vperm.xlu0 %163, %v149
      %v165 = vpop.permute.xlu0 %164
      %166 = vset.pattern.permute.xlu0 0
      %167 = vperm.xlu0 %166, %v150
      %v168 = vpop.permute.xlu0 %167
      %169 = vset.pattern.permute.xlu0 0
      %170 = vperm.xlu0 %169, %v151
      %v171 = vpop.permute.xlu0 %170
      %172 = vset.pattern.permute.xlu0 0
      %173 = vperm.xlu0 %172, %v152
      %v174 = vpop.permute.xlu0 %173
      %175 = vset.pattern.permute.xlu0 0
      %176 = vperm.xlu0 %175, %v153
      %v177 = vpop.permute.xlu0 %176
      %178 = vset.pattern.permute.xlu0 0
      %179 = vperm.xlu0 %178, %v154
      %v180 = vpop.permute.xlu0 %179
      %vm181 = vcmp.eq.s32.totalorder %v156, %v159
      %vm182 = vcmp.eq.s32.totalorder %v156, %v162
      %vm183 = vcmp.eq.s32.totalorder %v156, %v165
      %vm184 = vcmp.eq.s32.totalorder %v156, %v168
      %vm185 = vcmp.eq.s32.totalorder %v156, %v171
      %vm186 = vcmp.eq.s32.totalorder %v156, %v174
      %vm187 = vcmp.eq.s32.totalorder %v156, %v177
      %vm188 = vcmp.eq.s32.totalorder %v156, %v180
      %v189 = vsel %vm181, 1, 0
      %v190 = vsel %vm182, 1, 0
      %v191 = vsel %vm183, 1, 0
      %v192 = vsel %vm184, 1, 0
      %v193 = vsel %vm185, 1, 0
      %v194 = vsel %vm186, 1, 0
      %v195 = vsel %vm187, 1, 0
      %v196 = vsel %vm188, 1, 0
      %v197 = vcvt.s32.f32 %v189
      %v198 = vcvt.s32.f32 %v190
      %v199 = vcvt.s32.f32 %v191
      %v200 = vcvt.s32.f32 %v192
      %v201 = vcvt.s32.f32 %v193
      %v202 = vcvt.s32.f32 %v194
      %v203 = vcvt.s32.f32 %v195
      %v204 = vcvt.s32.f32 %v196
      %vm205 = vcmask 457728
      %v207 = vsel %vm205, %v197, 0
      %v210 = vsel %vm205, %v198, 0
      %v213 = vsel %vm205, %v199, 0
      %v216 = vsel %vm205, %v200, 0
      %v219 = vsel %vm205, %v201, 0
      %v222 = vsel %vm205, %v202, 0
      %v225 = vsel %vm205, %v203, 0
      %v228 = vsel %vm205, %v204, 0
      %230 = vmatprep.subr.mxu0 0.0
      %231 = vmatpush1.msra.mxu0 0.0
      %232 = vmatprep.subr.mxu0 0.0
      %233 = vmatpush1.msra.mxu0 0.0
      %234 = vmatprep.subr.mxu0 0.0
      %235 = vmatpush1.msra.mxu0 0.0
      %236 = vmatprep.subr.mxu0 0.0
      %237 = vmatpush1.msra.mxu0 0.0
      %238 = vmatprep.subr.mxu0 0.0
      %239 = vmatpush1.msra.mxu0 0.0
      %240 = vmatprep.subr.mxu0 0.0
      %241 = vmatpush1.msra.mxu0 0.0
      %242 = vmatprep.subr.mxu0 0.0
      %243 = vmatpush1.msra.mxu0 0.0
      %244 = vmatprep.subr.mxu0 0.0
      %245 = vmatpush1.msra.mxu0 0.0
      %246 = vmatprep.subr.mxu0 0.0
      %247 = vmatpush1.msra.mxu0 0.0
      %248 = vmatprep.subr.mxu0 0.0
      %v249 = vand.u32 %v146, 4294901760
      %250 = vmatpush1.msra.mxu0 %v249
      %251 = vmatprep.subr.mxu0 0.0
      %v252 = vand.u32 %v145, 4294901760
      %253 = vmatpush1.msra.mxu0 %v252
      %254 = vmatprep.subr.mxu0 0.0
      %v255 = vand.u32 %v144, 4294901760
      %256 = vmatpush1.msra.mxu0 %v255
      %257 = vmatprep.subr.mxu0 0.0
      %v258 = vand.u32 %v143, 4294901760
      %259 = vmatpush1.msra.mxu0 %v258
      %260 = vmatprep.subr.mxu0 0.0
      %v261 = vand.u32 %v142, 4294901760
      %262 = vmatpush1.msra.mxu0 %v261
      %263 = vmatprep.subr.mxu0 0.0
      %v264 = vand.u32 %v141, 4294901760
      %265 = vmatpush1.msra.mxu0 %v264
      %266 = vmatprep.subr.mxu0 0.0
      %v267 = vand.u32 %v140, 4294901760
      %268 = vmatpush1.msra.mxu0 %v267
      %269 = vmatprep.subr.mxu0 0.0
      %270 = vmatpush2.msra.mxu0 0.0
      %271 = vmatprep.subr.mxu0 0.0
      %272 = vmatpush2.msra.mxu0 0.0
      %273 = vmatprep.subr.mxu0 0.0
      %274 = vmatpush2.msra.mxu0 0.0
      %275 = vmatprep.subr.mxu0 0.0
      %276 = vmatpush2.msra.mxu0 0.0
      %277 = vmatprep.subr.mxu0 0.0
      %278 = vmatpush2.msra.mxu0 0.0
      %279 = vmatprep.subr.mxu0 0.0
      %280 = vmatpush2.msra.mxu0 0.0
      %281 = vmatprep.subr.mxu0 0.0
      %282 = vmatpush2.msra.mxu0 0.0
      %283 = vmatprep.subr.mxu0 0.0
      %284 = vmatpush2.msra.mxu0 0.0
      %285 = vmatprep.subr.mxu0 0.0
      %286 = vmatpush2.msra.mxu0 0.0
      %287 = vmatprep.subr.mxu0 0.0
      %288 = vmatpush2.msra.mxu0 0.0
      %289 = vmatprep.subr.mxu0 0.0
      %290 = vmatpush2.msra.mxu0 0.0
      %291 = vmatprep.subr.mxu0 0.0
      %292 = vmatpush2.msra.mxu0 0.0
      %293 = vmatprep.subr.mxu0 0.0
      %294 = vmatpush2.msra.mxu0 0.0
      %295 = vmatprep.subr.mxu0 0.0
      %296 = vmatpush2.msra.mxu0 0.0
      %297 = vmatprep.subr.mxu0 0.0
      %298 = vmatpush2.msra.mxu0 0.0
      %299 = vmatprep.subr.mxu0 0.0
      %300 = vmatpush2.msra.mxu0 0.0
      %301 = vmatprep.mubr.f32.mxu0 0.0
      %v302 = vand.u32 %v207, 4294901760
      %v303 = vsub.f32 %v207, %v302
      %v304 = vand.u32 %v303, 4294901760
      %v305 = vsub.f32 %v303, %v304
      %v306 = vand.u32 %v305, 4294901760
      %307 = vmatmul.mubr.f32.gmra.mxu0 %v306
      %v308 = vpop.f32.mrf.mxu0
      %v309 = vadd.f32 0.0, %v308
      %v310 = vpop.f32.mrf.mxu0
      %311 = vmatprep.mubr.f32.mxu0 0.0
      %v312 = vand.u32 %v210, 4294901760
      %v313 = vsub.f32 %v210, %v312
      %v314 = vand.u32 %v313, 4294901760
      %v315 = vsub.f32 %v313, %v314
      %v316 = vand.u32 %v315, 4294901760
      %317 = vmatmul.mubr.f32.gmra.mxu0 %v316
      %v318 = vpop.f32.mrf.mxu0
      %v319 = vadd.f32 0.0, %v318
      %v320 = vpop.f32.mrf.mxu0
      %321 = vmatprep.mubr.f32.mxu0 0.0
      %v322 = vand.u32 %v213, 4294901760
      %v323 = vsub.f32 %v213, %v322
      %v324 = vand.u32 %v323, 4294901760
      %v325 = vsub.f32 %v323, %v324
      %v326 = vand.u32 %v325, 4294901760
      %327 = vmatmul.mubr.f32.gmra.mxu0 %v326
      %v328 = vpop.f32.mrf.mxu0
      %v329 = vadd.f32 0.0, %v328
      %v330 = vpop.f32.mrf.mxu0
      %331 = vmatprep.mubr.f32.mxu0 0.0
      %v332 = vand.u32 %v216, 4294901760
      %v333 = vsub.f32 %v216, %v332
      %v334 = vand.u32 %v333, 4294901760
      %v335 = vsub.f32 %v333, %v334
      %v336 = vand.u32 %v335, 4294901760
      %337 = vmatmul.mubr.f32.gmra.mxu0 %v336
      %v338 = vpop.f32.mrf.mxu0
      %v339 = vadd.f32 0.0, %v338
      %v340 = vpop.f32.mrf.mxu0
      %341 = vmatprep.mubr.f32.mxu0 0.0
      %v342 = vand.u32 %v219, 4294901760
      %v343 = vsub.f32 %v219, %v342
      %v344 = vand.u32 %v343, 4294901760
      %v345 = vsub.f32 %v343, %v344
      %v346 = vand.u32 %v345, 4294901760
      %347 = vmatmul.mubr.f32.gmra.mxu0 %v346
      %v348 = vpop.f32.mrf.mxu0
      %v349 = vadd.f32 0.0, %v348
      %v350 = vpop.f32.mrf.mxu0
      %351 = vmatprep.mubr.f32.mxu0 0.0
      %v352 = vand.u32 %v222, 4294901760
      %v353 = vsub.f32 %v222, %v352
      %v354 = vand.u32 %v353, 4294901760
      %v355 = vsub.f32 %v353, %v354
      %v356 = vand.u32 %v355, 4294901760
      %357 = vmatmul.mubr.f32.gmra.mxu0 %v356
      %v358 = vpop.f32.mrf.mxu0
      %v359 = vadd.f32 0.0, %v358
      %v360 = vpop.f32.mrf.mxu0
      %361 = vmatprep.mubr.f32.mxu0 0.0
      %v362 = vand.u32 %v225, 4294901760
      %v363 = vsub.f32 %v225, %v362
      %v364 = vand.u32 %v363, 4294901760
      %v365 = vsub.f32 %v363, %v364
      %v366 = vand.u32 %v365, 4294901760
      %367 = vmatmul.mubr.f32.gmra.mxu0 %v366
      %v368 = vpop.f32.mrf.mxu0
      %v369 = vadd.f32 0.0, %v368
      %v370 = vpop.f32.mrf.mxu0
      %371 = vmatprep.mubr.f32.mxu0 0.0
      %v372 = vand.u32 %v228, 4294901760
      %v373 = vsub.f32 %v228, %v372
      %v374 = vand.u32 %v373, 4294901760
      %v375 = vsub.f32 %v373, %v374
      %v376 = vand.u32 %v375, 4294901760
      %377 = vmatmul.mubr.f32.gmra.mxu0 %v376
      %v378 = vpop.f32.mrf.mxu0
      %v379 = vadd.f32 0.0, %v378
      %v380 = vpop.f32.mrf.mxu0
      %381 = vdwg.mxu0
      %382 = vmatprep.subr.mxu0 0.0
      %383 = vmatpush1.msra.mxu0 0.0
      %384 = vmatprep.subr.mxu0 0.0
      %385 = vmatpush1.msra.mxu0 0.0
      %386 = vmatprep.subr.mxu0 0.0
      %387 = vmatpush1.msra.mxu0 0.0
      %388 = vmatprep.subr.mxu0 0.0
      %389 = vmatpush1.msra.mxu0 0.0
      %390 = vmatprep.subr.mxu0 0.0
      %391 = vmatpush1.msra.mxu0 0.0
      %392 = vmatprep.subr.mxu0 0.0
      %393 = vmatpush1.msra.mxu0 0.0
      %394 = vmatprep.subr.mxu0 0.0
      %395 = vmatpush1.msra.mxu0 0.0
      %396 = vmatprep.subr.mxu0 0.0
      %397 = vmatpush1.msra.mxu0 0.0
      %398 = vmatprep.subr.mxu0 0.0
      %399 = vmatpush1.msra.mxu0 0.0
      %400 = vmatprep.subr.mxu0 0.0
      %v401 = vand.u32 %v146, 4294901760
      %v402 = vsub.f32 %v146, %v401
      %v403 = vand.u32 %v402, 4294901760
      %v404 = vsub.f32 %v402, %v403
      %v405 = vand.u32 %v404, 4294901760
      %406 = vmatpush1.msra.mxu0 %v405
      %407 = vmatprep.subr.mxu0 0.0
      %v408 = vand.u32 %v145, 4294901760
      %v409 = vsub.f32 %v145, %v408
      %v410 = vand.u32 %v409, 4294901760
      %v411 = vsub.f32 %v409, %v410
      %v412 = vand.u32 %v411, 4294901760
      %413 = vmatpush1.msra.mxu0 %v412
      %414 = vmatprep.subr.mxu0 0.0
      %v415 = vand.u32 %v144, 4294901760
      %v416 = vsub.f32 %v144, %v415
      %v417 = vand.u32 %v416, 4294901760
      %v418 = vsub.f32 %v416, %v417
      %v419 = vand.u32 %v418, 4294901760
      %420 = vmatpush1.msra.mxu0 %v419
      %421 = vmatprep.subr.mxu0 0.0
      %v422 = vand.u32 %v143, 4294901760
      %v423 = vsub.f32 %v143, %v422
      %v424 = vand.u32 %v423, 4294901760
      %v425 = vsub.f32 %v423, %v424
      %v426 = vand.u32 %v425, 4294901760
      %427 = vmatpush1.msra.mxu0 %v426
      %428 = vmatprep.subr.mxu0 0.0
      %v429 = vand.u32 %v142, 4294901760
      %v430 = vsub.f32 %v142, %v429
      %v431 = vand.u32 %v430, 4294901760
      %v432 = vsub.f32 %v430, %v431
      %v433 = vand.u32 %v432, 4294901760
      %434 = vmatpush1.msra.mxu0 %v433
      %435 = vmatprep.subr.mxu0 0.0
      %v436 = vand.u32 %v141, 4294901760
      %v437 = vsub.f32 %v141, %v436
      %v438 = vand.u32 %v437, 4294901760
      %v439 = vsub.f32 %v437, %v438
      %v440 = vand.u32 %v439, 4294901760
      %441 = vmatpush1.msra.mxu0 %v440
      %442 = vmatprep.subr.mxu0 0.0
      %v443 = vand.u32 %v140, 4294901760
      %v444 = vsub.f32 %v140, %v443
      %v445 = vand.u32 %v444, 4294901760
      %v446 = vsub.f32 %v444, %v445
      %v447 = vand.u32 %v446, 4294901760
      %448 = vmatpush1.msra.mxu0 %v447
      %449 = vmatprep.subr.mxu0 0.0
      %450 = vmatpush2.msra.mxu0 0.0
      %451 = vmatprep.subr.mxu0 0.0
      %452 = vmatpush2.msra.mxu0 0.0
      %453 = vmatprep.subr.mxu0 0.0
      %454 = vmatpush2.msra.mxu0 0.0
      %455 = vmatprep.subr.mxu0 0.0
      %456 = vmatpush2.msra.mxu0 0.0
      %457 = vmatprep.subr.mxu0 0.0
      %458 = vmatpush2.msra.mxu0 0.0
      %459 = vmatprep.subr.mxu0 0.0
      %460 = vmatpush2.msra.mxu0 0.0
      %461 = vmatprep.subr.mxu0 0.0
      %462 = vmatpush2.msra.mxu0 0.0
      %463 = vmatprep.subr.mxu0 0.0
      %464 = vmatpush2.msra.mxu0 0.0
      %465 = vmatprep.subr.mxu0 0.0
      %466 = vmatpush2.msra.mxu0 0.0
      %467 = vmatprep.subr.mxu0 0.0
      %468 = vmatpush2.msra.mxu0 0.0
      %469 = vmatprep.subr.mxu0 0.0
      %470 = vmatpush2.msra.mxu0 0.0
      %471 = vmatprep.subr.mxu0 0.0
      %472 = vmatpush2.msra.mxu0 0.0
      %473 = vmatprep.subr.mxu0 0.0
      %474 = vmatpush2.msra.mxu0 0.0
      %475 = vmatprep.subr.mxu0 0.0
      %476 = vmatpush2.msra.mxu0 0.0
      %477 = vmatprep.subr.mxu0 0.0
      %478 = vmatpush2.msra.mxu0 0.0
      %479 = vmatprep.subr.mxu0 0.0
      %480 = vmatpush2.msra.mxu0 0.0
      %481 = vmatprep.mubr.f32.mxu0 0.0
      %v482 = vand.u32 %v207, 4294901760
      %483 = vmatmul.mubr.f32.gmra.mxu0 %v482
      %v484 = vpop.f32.mrf.mxu0
      %v485 = vadd.f32 %v309, %v484
      %v486 = vpop.f32.mrf.mxu0
      %487 = vmatprep.mubr.f32.mxu0 0.0
      %v488 = vand.u32 %v210, 4294901760
      %489 = vmatmul.mubr.f32.gmra.mxu0 %v488
      %v490 = vpop.f32.mrf.mxu0
      %v491 = vadd.f32 %v319, %v490
      %v492 = vpop.f32.mrf.mxu0
      %493 = vmatprep.mubr.f32.mxu0 0.0
      %v494 = vand.u32 %v213, 4294901760
      %495 = vmatmul.mubr.f32.gmra.mxu0 %v494
      %v496 = vpop.f32.mrf.mxu0
      %v497 = vadd.f32 %v329, %v496
      %v498 = vpop.f32.mrf.mxu0
      %499 = vmatprep.mubr.f32.mxu0 0.0
      %v500 = vand.u32 %v216, 4294901760
      %501 = vmatmul.mubr.f32.gmra.mxu0 %v500
      %v502 = vpop.f32.mrf.mxu0
      %v503 = vadd.f32 %v339, %v502
      %v504 = vpop.f32.mrf.mxu0
      %505 = vmatprep.mubr.f32.mxu0 0.0
      %v506 = vand.u32 %v219, 4294901760
      %507 = vmatmul.mubr.f32.gmra.mxu0 %v506
      %v508 = vpop.f32.mrf.mxu0
      %v509 = vadd.f32 %v349, %v508
      %v510 = vpop.f32.mrf.mxu0
      %511 = vmatprep.mubr.f32.mxu0 0.0
      %v512 = vand.u32 %v222, 4294901760
      %513 = vmatmul.mubr.f32.gmra.mxu0 %v512
      %v514 = vpop.f32.mrf.mxu0
      %v515 = vadd.f32 %v359, %v514
      %v516 = vpop.f32.mrf.mxu0
      %517 = vmatprep.mubr.f32.mxu0 0.0
      %v518 = vand.u32 %v225, 4294901760
      %519 = vmatmul.mubr.f32.gmra.mxu0 %v518
      %v520 = vpop.f32.mrf.mxu0
      %v521 = vadd.f32 %v369, %v520
      %v522 = vpop.f32.mrf.mxu0
      %523 = vmatprep.mubr.f32.mxu0 0.0
      %v524 = vand.u32 %v228, 4294901760
      %525 = vmatmul.mubr.f32.gmra.mxu0 %v524
      %v526 = vpop.f32.mrf.mxu0
      %v527 = vadd.f32 %v379, %v526
      %v528 = vpop.f32.mrf.mxu0
      %529 = vdwg.mxu0
      %530 = vmatprep.subr.mxu0 0.0
      %531 = vmatpush1.msra.mxu0 0.0
      %532 = vmatprep.subr.mxu0 0.0
      %533 = vmatpush1.msra.mxu0 0.0
      %534 = vmatprep.subr.mxu0 0.0
      %535 = vmatpush1.msra.mxu0 0.0
      %536 = vmatprep.subr.mxu0 0.0
      %537 = vmatpush1.msra.mxu0 0.0
      %538 = vmatprep.subr.mxu0 0.0
      %539 = vmatpush1.msra.mxu0 0.0
      %540 = vmatprep.subr.mxu0 0.0
      %541 = vmatpush1.msra.mxu0 0.0
      %542 = vmatprep.subr.mxu0 0.0
      %543 = vmatpush1.msra.mxu0 0.0
      %544 = vmatprep.subr.mxu0 0.0
      %545 = vmatpush1.msra.mxu0 0.0
      %546 = vmatprep.subr.mxu0 0.0
      %547 = vmatpush1.msra.mxu0 0.0
      %548 = vmatprep.subr.mxu0 0.0
      %v549 = vand.u32 %v146, 4294901760
      %v550 = vsub.f32 %v146, %v549
      %551 = vmatpush1.msra.mxu0 %v550
      %552 = vmatprep.subr.mxu0 0.0
      %v553 = vand.u32 %v145, 4294901760
      %v554 = vsub.f32 %v145, %v553
      %555 = vmatpush1.msra.mxu0 %v554
      %556 = vmatprep.subr.mxu0 0.0
      %v557 = vand.u32 %v144, 4294901760
      %v558 = vsub.f32 %v144, %v557
      %559 = vmatpush1.msra.mxu0 %v558
      %560 = vmatprep.subr.mxu0 0.0
      %v561 = vand.u32 %v143, 4294901760
      %v562 = vsub.f32 %v143, %v561
      %563 = vmatpush1.msra.mxu0 %v562
      %564 = vmatprep.subr.mxu0 0.0
      %v565 = vand.u32 %v142, 4294901760
      %v566 = vsub.f32 %v142, %v565
      %567 = vmatpush1.msra.mxu0 %v566
      %568 = vmatprep.subr.mxu0 0.0
      %v569 = vand.u32 %v141, 4294901760
      %v570 = vsub.f32 %v141, %v569
      %571 = vmatpush1.msra.mxu0 %v570
      %572 = vmatprep.subr.mxu0 0.0
      %v573 = vand.u32 %v140, 4294901760
      %v574 = vsub.f32 %v140, %v573
      %575 = vmatpush1.msra.mxu0 %v574
      %576 = vmatprep.subr.mxu0 0.0
      %577 = vmatpush2.msra.mxu0 0.0
      %578 = vmatprep.subr.mxu0 0.0
      %579 = vmatpush2.msra.mxu0 0.0
      %580 = vmatprep.subr.mxu0 0.0
      %581 = vmatpush2.msra.mxu0 0.0
      %582 = vmatprep.subr.mxu0 0.0
      %583 = vmatpush2.msra.mxu0 0.0
      %584 = vmatprep.subr.mxu0 0.0
      %585 = vmatpush2.msra.mxu0 0.0
      %586 = vmatprep.subr.mxu0 0.0
      %587 = vmatpush2.msra.mxu0 0.0
      %588 = vmatprep.subr.mxu0 0.0
      %589 = vmatpush2.msra.mxu0 0.0
      %590 = vmatprep.subr.mxu0 0.0
      %591 = vmatpush2.msra.mxu0 0.0
      %592 = vmatprep.subr.mxu0 0.0
      %593 = vmatpush2.msra.mxu0 0.0
      %594 = vmatprep.subr.mxu0 0.0
      %595 = vmatpush2.msra.mxu0 0.0
      %596 = vmatprep.subr.mxu0 0.0
      %597 = vmatpush2.msra.mxu0 0.0
      %598 = vmatprep.subr.mxu0 0.0
      %599 = vmatpush2.msra.mxu0 0.0
      %600 = vmatprep.subr.mxu0 0.0
      %601 = vmatpush2.msra.mxu0 0.0
      %602 = vmatprep.subr.mxu0 0.0
      %603 = vmatpush2.msra.mxu0 0.0
      %604 = vmatprep.subr.mxu0 0.0
      %605 = vmatpush2.msra.mxu0 0.0
      %606 = vmatprep.subr.mxu0 0.0
      %607 = vmatpush2.msra.mxu0 0.0
      %608 = vmatprep.mubr.f32.mxu0 0.0
      %v609 = vand.u32 %v207, 4294901760
      %v610 = vsub.f32 %v207, %v609
      %611 = vmatmul.mubr.f32.gmra.mxu0 %v610
      %v612 = vpop.f32.mrf.mxu0
      %v613 = vadd.f32 %v485, %v612
      %v614 = vpop.f32.mrf.mxu0
      %615 = vmatprep.mubr.f32.mxu0 0.0
      %v616 = vand.u32 %v210, 4294901760
      %v617 = vsub.f32 %v210, %v616
      %618 = vmatmul.mubr.f32.gmra.mxu0 %v617
      %v619 = vpop.f32.mrf.mxu0
      %v620 = vadd.f32 %v491, %v619
      %v621 = vpop.f32.mrf.mxu0
      %622 = vmatprep.mubr.f32.mxu0 0.0
      %v623 = vand.u32 %v213, 4294901760
      %v624 = vsub.f32 %v213, %v623
      %625 = vmatmul.mubr.f32.gmra.mxu0 %v624
      %v626 = vpop.f32.mrf.mxu0
      %v627 = vadd.f32 %v497, %v626
      %v628 = vpop.f32.mrf.mxu0
      %629 = vmatprep.mubr.f32.mxu0 0.0
      %v630 = vand.u32 %v216, 4294901760
      %v631 = vsub.f32 %v216, %v630
      %632 = vmatmul.mubr.f32.gmra.mxu0 %v631
      %v633 = vpop.f32.mrf.mxu0
      %v634 = vadd.f32 %v503, %v633
      %v635 = vpop.f32.mrf.mxu0
      %636 = vmatprep.mubr.f32.mxu0 0.0
      %v637 = vand.u32 %v219, 4294901760
      %v638 = vsub.f32 %v219, %v637
      %639 = vmatmul.mubr.f32.gmra.mxu0 %v638
      %v640 = vpop.f32.mrf.mxu0
      %v641 = vadd.f32 %v509, %v640
      %v642 = vpop.f32.mrf.mxu0
      %643 = vmatprep.mubr.f32.mxu0 0.0
      %v644 = vand.u32 %v222, 4294901760
      %v645 = vsub.f32 %v222, %v644
      %646 = vmatmul.mubr.f32.gmra.mxu0 %v645
      %v647 = vpop.f32.mrf.mxu0
      %v648 = vadd.f32 %v515, %v647
      %v649 = vpop.f32.mrf.mxu0
      %650 = vmatprep.mubr.f32.mxu0 0.0
      %v651 = vand.u32 %v225, 4294901760
      %v652 = vsub.f32 %v225, %v651
      %653 = vmatmul.mubr.f32.gmra.mxu0 %v652
      %v654 = vpop.f32.mrf.mxu0
      %v655 = vadd.f32 %v521, %v654
      %v656 = vpop.f32.mrf.mxu0
      %657 = vmatprep.mubr.f32.mxu0 0.0
      %v658 = vand.u32 %v228, 4294901760
      %v659 = vsub.f32 %v228, %v658
      %660 = vmatmul.mubr.f32.gmra.mxu0 %v659
      %v661 = vpop.f32.mrf.mxu0
      %v662 = vadd.f32 %v527, %v661
      %v663 = vpop.f32.mrf.mxu0
      %664 = vdwg.mxu0
      %665 = vmatprep.subr.mxu0 0.0
      %666 = vmatpush1.msra.mxu0 0.0
      %667 = vmatprep.subr.mxu0 0.0
      %668 = vmatpush1.msra.mxu0 0.0
      %669 = vmatprep.subr.mxu0 0.0
      %670 = vmatpush1.msra.mxu0 0.0
      %671 = vmatprep.subr.mxu0 0.0
      %672 = vmatpush1.msra.mxu0 0.0
      %673 = vmatprep.subr.mxu0 0.0
      %674 = vmatpush1.msra.mxu0 0.0
      %675 = vmatprep.subr.mxu0 0.0
      %676 = vmatpush1.msra.mxu0 0.0
      %677 = vmatprep.subr.mxu0 0.0
      %678 = vmatpush1.msra.mxu0 0.0
      %679 = vmatprep.subr.mxu0 0.0
      %680 = vmatpush1.msra.mxu0 0.0
      %681 = vmatprep.subr.mxu0 0.0
      %682 = vmatpush1.msra.mxu0 0.0
      %683 = vmatprep.subr.mxu0 0.0
      %v684 = vand.u32 %v146, 4294901760
      %685 = vmatpush1.msra.mxu0 %v684
      %686 = vmatprep.subr.mxu0 0.0
      %v687 = vand.u32 %v145, 4294901760
      %688 = vmatpush1.msra.mxu0 %v687
      %689 = vmatprep.subr.mxu0 0.0
      %v690 = vand.u32 %v144, 4294901760
      %691 = vmatpush1.msra.mxu0 %v690
      %692 = vmatprep.subr.mxu0 0.0
      %v693 = vand.u32 %v143, 4294901760
      %694 = vmatpush1.msra.mxu0 %v693
      %695 = vmatprep.subr.mxu0 0.0
      %v696 = vand.u32 %v142, 4294901760
      %697 = vmatpush1.msra.mxu0 %v696
      %698 = vmatprep.subr.mxu0 0.0
      %v699 = vand.u32 %v141, 4294901760
      %700 = vmatpush1.msra.mxu0 %v699
      %701 = vmatprep.subr.mxu0 0.0
      %v702 = vand.u32 %v140, 4294901760
      %703 = vmatpush1.msra.mxu0 %v702
      %704 = vmatprep.subr.mxu0 0.0
      %705 = vmatpush2.msra.mxu0 0.0
      %706 = vmatprep.subr.mxu0 0.0
      %707 = vmatpush2.msra.mxu0 0.0
      %708 = vmatprep.subr.mxu0 0.0
      %709 = vmatpush2.msra.mxu0 0.0
      %710 = vmatprep.subr.mxu0 0.0
      %711 = vmatpush2.msra.mxu0 0.0
      %712 = vmatprep.subr.mxu0 0.0
      %713 = vmatpush2.msra.mxu0 0.0
      %714 = vmatprep.subr.mxu0 0.0
      %715 = vmatpush2.msra.mxu0 0.0
      %716 = vmatprep.subr.mxu0 0.0
      %717 = vmatpush2.msra.mxu0 0.0
      %718 = vmatprep.subr.mxu0 0.0
      %719 = vmatpush2.msra.mxu0 0.0
      %720 = vmatprep.subr.mxu0 0.0
      %721 = vmatpush2.msra.mxu0 0.0
      %722 = vmatprep.subr.mxu0 0.0
      %723 = vmatpush2.msra.mxu0 0.0
      %724 = vmatprep.subr.mxu0 0.0
      %725 = vmatpush2.msra.mxu0 0.0
      %726 = vmatprep.subr.mxu0 0.0
      %727 = vmatpush2.msra.mxu0 0.0
      %728 = vmatprep.subr.mxu0 0.0
      %729 = vmatpush2.msra.mxu0 0.0
      %730 = vmatprep.subr.mxu0 0.0
      %731 = vmatpush2.msra.mxu0 0.0
      %732 = vmatprep.subr.mxu0 0.0
      %733 = vmatpush2.msra.mxu0 0.0
      %734 = vmatprep.subr.mxu0 0.0
      %735 = vmatpush2.msra.mxu0 0.0
      %736 = vmatprep.mubr.f32.mxu0 0.0
      %v737 = vand.u32 %v207, 4294901760
      %v738 = vsub.f32 %v207, %v737
      %v739 = vand.u32 %v738, 4294901760
      %740 = vmatmul.mubr.f32.gmra.mxu0 %v739
      %v741 = vpop.f32.mrf.mxu0
      %v742 = vadd.f32 %v613, %v741
      %v743 = vpop.f32.mrf.mxu0
      %744 = vmatprep.mubr.f32.mxu0 0.0
      %v745 = vand.u32 %v210, 4294901760
      %v746 = vsub.f32 %v210, %v745
      %v747 = vand.u32 %v746, 4294901760
      %748 = vmatmul.mubr.f32.gmra.mxu0 %v747
      %v749 = vpop.f32.mrf.mxu0
      %v750 = vadd.f32 %v620, %v749
      %v751 = vpop.f32.mrf.mxu0
      %752 = vmatprep.mubr.f32.mxu0 0.0
      %v753 = vand.u32 %v213, 4294901760
      %v754 = vsub.f32 %v213, %v753
      %v755 = vand.u32 %v754, 4294901760
      %756 = vmatmul.mubr.f32.gmra.mxu0 %v755
      %v757 = vpop.f32.mrf.mxu0
      %v758 = vadd.f32 %v627, %v757
      %v759 = vpop.f32.mrf.mxu0
      %760 = vmatprep.mubr.f32.mxu0 0.0
      %v761 = vand.u32 %v216, 4294901760
      %v762 = vsub.f32 %v216, %v761
      %v763 = vand.u32 %v762, 4294901760
      %764 = vmatmul.mubr.f32.gmra.mxu0 %v763
      %v765 = vpop.f32.mrf.mxu0
      %v766 = vadd.f32 %v634, %v765
      %v767 = vpop.f32.mrf.mxu0
      %768 = vmatprep.mubr.f32.mxu0 0.0
      %v769 = vand.u32 %v219, 4294901760
      %v770 = vsub.f32 %v219, %v769
      %v771 = vand.u32 %v770, 4294901760
      %772 = vmatmul.mubr.f32.gmra.mxu0 %v771
      %v773 = vpop.f32.mrf.mxu0
      %v774 = vadd.f32 %v641, %v773
      %v775 = vpop.f32.mrf.mxu0
      %776 = vmatprep.mubr.f32.mxu0 0.0
      %v777 = vand.u32 %v222, 4294901760
      %v778 = vsub.f32 %v222, %v777
      %v779 = vand.u32 %v778, 4294901760
      %780 = vmatmul.mubr.f32.gmra.mxu0 %v779
      %v781 = vpop.f32.mrf.mxu0
      %v782 = vadd.f32 %v648, %v781
      %v783 = vpop.f32.mrf.mxu0
      %784 = vmatprep.mubr.f32.mxu0 0.0
      %v785 = vand.u32 %v225, 4294901760
      %v786 = vsub.f32 %v225, %v785
      %v787 = vand.u32 %v786, 4294901760
      %788 = vmatmul.mubr.f32.gmra.mxu0 %v787
      %v789 = vpop.f32.mrf.mxu0
      %v790 = vadd.f32 %v655, %v789
      %v791 = vpop.f32.mrf.mxu0
      %792 = vmatprep.mubr.f32.mxu0 0.0
      %v793 = vand.u32 %v228, 4294901760
      %v794 = vsub.f32 %v228, %v793
      %v795 = vand.u32 %v794, 4294901760
      %796 = vmatmul.mubr.f32.gmra.mxu0 %v795
      %v797 = vpop.f32.mrf.mxu0
      %v798 = vadd.f32 %v662, %v797
      %v799 = vpop.f32.mrf.mxu0
      %800 = vdwg.mxu0
      %801 = vmatprep.subr.mxu0 0.0
      %802 = vmatpush1.msra.mxu0 0.0
      %803 = vmatprep.subr.mxu0 0.0
      %804 = vmatpush1.msra.mxu0 0.0
      %805 = vmatprep.subr.mxu0 0.0
      %806 = vmatpush1.msra.mxu0 0.0
      %807 = vmatprep.subr.mxu0 0.0
      %808 = vmatpush1.msra.mxu0 0.0
      %809 = vmatprep.subr.mxu0 0.0
      %810 = vmatpush1.msra.mxu0 0.0
      %811 = vmatprep.subr.mxu0 0.0
      %812 = vmatpush1.msra.mxu0 0.0
      %813 = vmatprep.subr.mxu0 0.0
      %814 = vmatpush1.msra.mxu0 0.0
      %815 = vmatprep.subr.mxu0 0.0
      %816 = vmatpush1.msra.mxu0 0.0
      %817 = vmatprep.subr.mxu0 0.0
      %818 = vmatpush1.msra.mxu0 0.0
      %819 = vmatprep.subr.mxu0 0.0
      %v820 = vand.u32 %v146, 4294901760
      %v821 = vsub.f32 %v146, %v820
      %v822 = vand.u32 %v821, 4294901760
      %823 = vmatpush1.msra.mxu0 %v822
      %824 = vmatprep.subr.mxu0 0.0
      %v825 = vand.u32 %v145, 4294901760
      %v826 = vsub.f32 %v145, %v825
      %v827 = vand.u32 %v826, 4294901760
      %828 = vmatpush1.msra.mxu0 %v827
      %829 = vmatprep.subr.mxu0 0.0
      %v830 = vand.u32 %v144, 4294901760
      %v831 = vsub.f32 %v144, %v830
      %v832 = vand.u32 %v831, 4294901760
      %833 = vmatpush1.msra.mxu0 %v832
      %834 = vmatprep.subr.mxu0 0.0
      %v835 = vand.u32 %v143, 4294901760
      %v836 = vsub.f32 %v143, %v835
      %v837 = vand.u32 %v836, 4294901760
      %838 = vmatpush1.msra.mxu0 %v837
      %839 = vmatprep.subr.mxu0 0.0
      %v840 = vand.u32 %v142, 4294901760
      %v841 = vsub.f32 %v142, %v840
      %v842 = vand.u32 %v841, 4294901760
      %843 = vmatpush1.msra.mxu0 %v842
      %844 = vmatprep.subr.mxu0 0.0
      %v845 = vand.u32 %v141, 4294901760
      %v846 = vsub.f32 %v141, %v845
      %v847 = vand.u32 %v846, 4294901760
      %848 = vmatpush1.msra.mxu0 %v847
      %849 = vmatprep.subr.mxu0 0.0
      %v850 = vand.u32 %v140, 4294901760
      %v851 = vsub.f32 %v140, %v850
      %v852 = vand.u32 %v851, 4294901760
      %853 = vmatpush1.msra.mxu0 %v852
      %854 = vmatprep.subr.mxu0 0.0
      %855 = vmatpush2.msra.mxu0 0.0
      %856 = vmatprep.subr.mxu0 0.0
      %857 = vmatpush2.msra.mxu0 0.0
      %858 = vmatprep.subr.mxu0 0.0
      %859 = vmatpush2.msra.mxu0 0.0
      %860 = vmatprep.subr.mxu0 0.0
      %861 = vmatpush2.msra.mxu0 0.0
      %862 = vmatprep.subr.mxu0 0.0
      %863 = vmatpush2.msra.mxu0 0.0
      %864 = vmatprep.subr.mxu0 0.0
      %865 = vmatpush2.msra.mxu0 0.0
      %866 = vmatprep.subr.mxu0 0.0
      %867 = vmatpush2.msra.mxu0 0.0
      %868 = vmatprep.subr.mxu0 0.0
      %869 = vmatpush2.msra.mxu0 0.0
      %870 = vmatprep.subr.mxu0 0.0
      %871 = vmatpush2.msra.mxu0 0.0
      %872 = vmatprep.subr.mxu0 0.0
      %873 = vmatpush2.msra.mxu0 0.0
      %874 = vmatprep.subr.mxu0 0.0
      %875 = vmatpush2.msra.mxu0 0.0
      %876 = vmatprep.subr.mxu0 0.0
      %877 = vmatpush2.msra.mxu0 0.0
      %878 = vmatprep.subr.mxu0 0.0
      %879 = vmatpush2.msra.mxu0 0.0
      %880 = vmatprep.subr.mxu0 0.0
      %881 = vmatpush2.msra.mxu0 0.0
      %882 = vmatprep.subr.mxu0 0.0
      %883 = vmatpush2.msra.mxu0 0.0
      %884 = vmatprep.subr.mxu0 0.0
      %885 = vmatpush2.msra.mxu0 0.0
      %886 = vmatprep.mubr.f32.mxu0 0.0
      %v887 = vand.u32 %v207, 4294901760
      %888 = vmatmul.mubr.f32.gmra.mxu0 %v887
      %v889 = vpop.f32.mrf.mxu0
      %v890 = vadd.f32 %v742, %v889
      %v891 = vpop.f32.mrf.mxu0
      %892 = vmatprep.mubr.f32.mxu0 0.0
      %v893 = vand.u32 %v210, 4294901760
      %894 = vmatmul.mubr.f32.gmra.mxu0 %v893
      %v895 = vpop.f32.mrf.mxu0
      %v896 = vadd.f32 %v750, %v895
      %v897 = vpop.f32.mrf.mxu0
      %898 = vmatprep.mubr.f32.mxu0 0.0
      %v899 = vand.u32 %v213, 4294901760
      %900 = vmatmul.mubr.f32.gmra.mxu0 %v899
      %v901 = vpop.f32.mrf.mxu0
      %v902 = vadd.f32 %v758, %v901
      %v903 = vpop.f32.mrf.mxu0
      %904 = vmatprep.mubr.f32.mxu0 0.0
      %v905 = vand.u32 %v216, 4294901760
      %906 = vmatmul.mubr.f32.gmra.mxu0 %v905
      %v907 = vpop.f32.mrf.mxu0
      %v908 = vadd.f32 %v766, %v907
      %v909 = vpop.f32.mrf.mxu0
      %910 = vmatprep.mubr.f32.mxu0 0.0
      %v911 = vand.u32 %v219, 4294901760
      %912 = vmatmul.mubr.f32.gmra.mxu0 %v911
      %v913 = vpop.f32.mrf.mxu0
      %v914 = vadd.f32 %v774, %v913
      %v915 = vpop.f32.mrf.mxu0
      %916 = vmatprep.mubr.f32.mxu0 0.0
      %v917 = vand.u32 %v222, 4294901760
      %918 = vmatmul.mubr.f32.gmra.mxu0 %v917
      %v919 = vpop.f32.mrf.mxu0
      %v920 = vadd.f32 %v782, %v919
      %v921 = vpop.f32.mrf.mxu0
      %922 = vmatprep.mubr.f32.mxu0 0.0
      %v923 = vand.u32 %v225, 4294901760
      %924 = vmatmul.mubr.f32.gmra.mxu0 %v923
      %v925 = vpop.f32.mrf.mxu0
      %v926 = vadd.f32 %v790, %v925
      %v927 = vpop.f32.mrf.mxu0
      %928 = vmatprep.mubr.f32.mxu0 0.0
      %v929 = vand.u32 %v228, 4294901760
      %930 = vmatmul.mubr.f32.gmra.mxu0 %v929
      %v931 = vpop.f32.mrf.mxu0
      %v932 = vadd.f32 %v798, %v931
      %v933 = vpop.f32.mrf.mxu0
      %934 = vdwg.mxu0
      %935 = vmatprep.subr.mxu0 0.0
      %936 = vmatpush1.msra.mxu0 0.0
      %937 = vmatprep.subr.mxu0 0.0
      %938 = vmatpush1.msra.mxu0 0.0
      %939 = vmatprep.subr.mxu0 0.0
      %940 = vmatpush1.msra.mxu0 0.0
      %941 = vmatprep.subr.mxu0 0.0
      %942 = vmatpush1.msra.mxu0 0.0
      %943 = vmatprep.subr.mxu0 0.0
      %944 = vmatpush1.msra.mxu0 0.0
      %945 = vmatprep.subr.mxu0 0.0
      %946 = vmatpush1.msra.mxu0 0.0
      %947 = vmatprep.subr.mxu0 0.0
      %948 = vmatpush1.msra.mxu0 0.0
      %949 = vmatprep.subr.mxu0 0.0
      %950 = vmatpush1.msra.mxu0 0.0
      %951 = vmatprep.subr.mxu0 0.0
      %952 = vmatpush1.msra.mxu0 0.0
      %953 = vmatprep.subr.mxu0 0.0
      %v954 = vand.u32 %v146, 4294901760
      %955 = vmatpush1.msra.mxu0 %v954
      %956 = vmatprep.subr.mxu0 0.0
      %v957 = vand.u32 %v145, 4294901760
      %958 = vmatpush1.msra.mxu0 %v957
      %959 = vmatprep.subr.mxu0 0.0
      %v960 = vand.u32 %v144, 4294901760
      %961 = vmatpush1.msra.mxu0 %v960
      %962 = vmatprep.subr.mxu0 0.0
      %v963 = vand.u32 %v143, 4294901760
      %964 = vmatpush1.msra.mxu0 %v963
      %965 = vmatprep.subr.mxu0 0.0
      %v966 = vand.u32 %v142, 4294901760
      %967 = vmatpush1.msra.mxu0 %v966
      %968 = vmatprep.subr.mxu0 0.0
      %v969 = vand.u32 %v141, 4294901760
      %970 = vmatpush1.msra.mxu0 %v969
      %971 = vmatprep.subr.mxu0 0.0
      %v972 = vand.u32 %v140, 4294901760
      %973 = vmatpush1.msra.mxu0 %v972
      %974 = vmatprep.subr.mxu0 0.0
      %975 = vmatpush2.msra.mxu0 0.0
      %976 = vmatprep.subr.mxu0 0.0
      %977 = vmatpush2.msra.mxu0 0.0
      %978 = vmatprep.subr.mxu0 0.0
      %979 = vmatpush2.msra.mxu0 0.0
      %980 = vmatprep.subr.mxu0 0.0
      %981 = vmatpush2.msra.mxu0 0.0
      %982 = vmatprep.subr.mxu0 0.0
      %983 = vmatpush2.msra.mxu0 0.0
      %984 = vmatprep.subr.mxu0 0.0
      %985 = vmatpush2.msra.mxu0 0.0
      %986 = vmatprep.subr.mxu0 0.0
      %987 = vmatpush2.msra.mxu0 0.0
      %988 = vmatprep.subr.mxu0 0.0
      %989 = vmatpush2.msra.mxu0 0.0
      %990 = vmatprep.subr.mxu0 0.0
      %991 = vmatpush2.msra.mxu0 0.0
      %992 = vmatprep.subr.mxu0 0.0
      %993 = vmatpush2.msra.mxu0 0.0
      %994 = vmatprep.subr.mxu0 0.0
      %995 = vmatpush2.msra.mxu0 0.0
      %996 = vmatprep.subr.mxu0 0.0
      %997 = vmatpush2.msra.mxu0 0.0
      %998 = vmatprep.subr.mxu0 0.0
      %999 = vmatpush2.msra.mxu0 0.0
      %1000 = vmatprep.subr.mxu0 0.0
      %1001 = vmatpush2.msra.mxu0 0.0
      %1002 = vmatprep.subr.mxu0 0.0
      %1003 = vmatpush2.msra.mxu0 0.0
      %1004 = vmatprep.subr.mxu0 0.0
      %1005 = vmatpush2.msra.mxu0 0.0
      %1006 = vmatprep.mubr.f32.mxu0 0.0
      %v1007 = vand.u32 %v207, 4294901760
      %1008 = vmatmul.mubr.f32.gmra.mxu0 %v1007
      %v1009 = vpop.f32.mrf.mxu0
      %v1010 = vadd.f32 %v890, %v1009
      %v1011 = vpop.f32.mrf.mxu0
      %1012 = vmatprep.mubr.f32.mxu0 0.0
      %v1013 = vand.u32 %v210, 4294901760
      %1014 = vmatmul.mubr.f32.gmra.mxu0 %v1013
      %v1015 = vpop.f32.mrf.mxu0
      %v1016 = vadd.f32 %v896, %v1015
      %v1017 = vpop.f32.mrf.mxu0
      %1018 = vmatprep.mubr.f32.mxu0 0.0
      %v1019 = vand.u32 %v213, 4294901760
      %1020 = vmatmul.mubr.f32.gmra.mxu0 %v1019
      %v1021 = vpop.f32.mrf.mxu0
      %v1022 = vadd.f32 %v902, %v1021
      %v1023 = vpop.f32.mrf.mxu0
      %1024 = vmatprep.mubr.f32.mxu0 0.0
      %v1025 = vand.u32 %v216, 4294901760
      %1026 = vmatmul.mubr.f32.gmra.mxu0 %v1025
      %v1027 = vpop.f32.mrf.mxu0
      %v1028 = vadd.f32 %v908, %v1027
      %v1029 = vpop.f32.mrf.mxu0
      %1030 = vmatprep.mubr.f32.mxu0 0.0
      %v1031 = vand.u32 %v219, 4294901760
      %1032 = vmatmul.mubr.f32.gmra.mxu0 %v1031
      %v1033 = vpop.f32.mrf.mxu0
      %v1034 = vadd.f32 %v914, %v1033
      %v1035 = vpop.f32.mrf.mxu0
      %1036 = vmatprep.mubr.f32.mxu0 0.0
      %v1037 = vand.u32 %v222, 4294901760
      %1038 = vmatmul.mubr.f32.gmra.mxu0 %v1037
      %v1039 = vpop.f32.mrf.mxu0
      %v1040 = vadd.f32 %v920, %v1039
      %v1041 = vpop.f32.mrf.mxu0
      %1042 = vmatprep.mubr.f32.mxu0 0.0
      %v1043 = vand.u32 %v225, 4294901760
      %1044 = vmatmul.mubr.f32.gmra.mxu0 %v1043
      %v1045 = vpop.f32.mrf.mxu0
      %v1046 = vadd.f32 %v926, %v1045
      %v1047 = vpop.f32.mrf.mxu0
      %1048 = vmatprep.mubr.f32.mxu0 0.0
      %v1049 = vand.u32 %v228, 4294901760
      %1050 = vmatmul.mubr.f32.gmra.mxu0 %v1049
      %v1051 = vpop.f32.mrf.mxu0
      %v1052 = vadd.f32 %v932, %v1051
      %v1053 = vpop.f32.mrf.mxu0
      %1054 = vdwg.mxu0
      %v1055 = vadd.f32 %v1010, %v1034
      %v1056 = vadd.f32 %v1016, %v1040
      %v1057 = vsub.f32 %v1055, %v1022
      %v1058 = vsub.f32 %v1056, %v1028
      %v1059 = vand.u32 2147483647, %v1057
      %v1060 = vand.u32 2147483647, %v1058
      %vm1061 = vcmask 162816
      %v1062 = vsel %vm1061, %v1059, 0.0
      %1063 = vadd.xlane.f32.xlu0 %v1062
      %v1064 = vpop.xlane.xlu0 %1063
      %v1065 = vsel %vm1061, %v1060, 0.0
      %1066 = vadd.xlane.f32.xlu0 %v1065
      %v1067 = vpop.xlane.xlu0 %1066
      %v1068 = vmul.f32 %v1052, %v1052
      %vm1069 = vcmask 7168
      %v1070 = vsel %vm1069, %v1068, 0.0
      %1071 = vadd.xlane.f32.xlu0 %v1070
      %v1072 = vpop.xlane.xlu0 %1071
      %v1073 = vrot.slane %v1072, 4
      %v1074 = vadd.f32 %v1072, %v1073
      %v1075 = vrot.slane %v1074, 2
      %v1076 = vadd.f32 %v1074, %v1075
      %v1077 = vrot.slane %v1076, 1
      %v1078 = vadd.f32 %v1076, %v1077
      %s1079 = vtos %v1078
      %v1080 = vrcp.pop 8.0
      %s1081 = vtos %v1080
      %s1082 = smul.f32 %s1079, %s1081
      %s1083 = smul.f32 %s1082, 0.1
      %v1084 = vmul.f32 %v1064, %v1064
      %v1085 = vsel %vm1069, %v1084, 0.0
      %1086 = vadd.xlane.f32.xlu0 %v1085
      %v1087 = vpop.xlane.xlu0 %1086
      %v1088 = vrot.slane %v1087, 4
      %v1089 = vadd.f32 %v1087, %v1088
      %v1090 = vrot.slane %v1089, 2
      %v1091 = vadd.f32 %v1089, %v1090
      %v1092 = vrot.slane %v1091, 1
      %v1093 = vadd.f32 %v1091, %v1092
      %s1094 = vtos %v1093
      %v1095 = vrcp.pop 8.0
      %s1096 = vtos %v1095
      %s1097 = smul.f32 %s1094, %s1096
      %v1098 = vsub.f32 2.0, %v1067
      %v1099 = vmul.f32 %v1098, %v1098
      %v1100 = vsel %vm1069, %v1099, 0.0
      %1101 = vadd.xlane.f32.xlu0 %v1100
      %v1102 = vpop.xlane.xlu0 %1101
      %v1103 = vrot.slane %v1102, 4
      %v1104 = vadd.f32 %v1102, %v1103
      %v1105 = vrot.slane %v1104, 2
      %v1106 = vadd.f32 %v1104, %v1105
      %v1107 = vrot.slane %v1106, 1
      %v1108 = vadd.f32 %v1106, %v1107
      %s1109 = vtos %v1108
      %v1110 = vrcp.pop 8.0
      %s1111 = vtos %v1110
      %s1112 = smul.f32 %s1109, %s1111
      %v1113 = vmul.f32 %v1046, %v1046
      %v1114 = vsel %vm1069, %v1113, 0.0
      %1115 = vadd.xlane.f32.xlu0 %v1114
      %v1116 = vpop.xlane.xlu0 %1115
      %v1117 = vrot.slane %v1116, 4
      %v1118 = vadd.f32 %v1116, %v1117
      %v1119 = vrot.slane %v1118, 2
      %v1120 = vadd.f32 %v1118, %v1119
      %v1121 = vrot.slane %v1120, 1
      %v1122 = vadd.f32 %v1120, %v1121
      %s1123 = vtos %v1122
      %v1124 = vrcp.pop 8.0
      %s1125 = vtos %v1124
      %s1126 = smul.f32 %s1123, %s1125
      %s1127 = sadd.f32 %s1112, %s1126
      %v1128 = vsel %vm1069, %v1098, 0.0
      %1129 = vadd.xlane.f32.xlu0 %v1128
      %v1130 = vpop.xlane.xlu0 %1129
      %v1131 = vrot.slane %v1130, 4
      %v1132 = vadd.f32 %v1130, %v1131
      %v1133 = vrot.slane %v1132, 2
      %v1134 = vadd.f32 %v1132, %v1133
      %v1135 = vrot.slane %v1134, 1
      %v1136 = vadd.f32 %v1134, %v1135
      %s1137 = vtos %v1136
      %v1138 = vrcp.pop 8.0
      %s1139 = vtos %v1138
      %s1140 = smul.f32 %s1137, %s1139
      %s1141 = smul.f32 %s1140, 2.0
      %v1142 = vsel %vm1069, %v1046, 0.0
      %1143 = vadd.xlane.f32.xlu0 %v1142
      %v1144 = vpop.xlane.xlu0 %1143
      %v1145 = vrot.slane %v1144, 4
      %v1146 = vadd.f32 %v1144, %v1145
      %v1147 = vrot.slane %v1146, 2
      %v1148 = vadd.f32 %v1146, %v1147
      %v1149 = vrot.slane %v1148, 1
      %v1150 = vadd.f32 %v1148, %v1149
      %s1151 = vtos %v1150
      %v1152 = vrcp.pop 8.0
      %s1153 = vtos %v1152
      %s1154 = smul.f32 %s1151, %s1153
      %s1155 = smul.f32 %s1141, %s1154
      %s1156 = ssub.f32 %s1127, %s1155
      %s1157 = sadd.f32 %s1083, %s1097
      %s1158 = sadd.f32 %s1157, %s1156
      %v1159 = vstv %s1158
      %vm1160 = vcmask 0
      %1161 = vst.msk [vmem:[%s139] sm:$0x1] %vm1160, %v1159
      %p1162 = scmp.lt.s32.totalorder %s13, 3
      %s1163 = scalar_select %p1162, %s13, 3
      %s1164 = scalar_lea.vmem %s2, %s1163
      // Predicated region
      $region29: #{transe_forward_steps.1} parent=27 // pred_check
        %p1165 = pneg %p78
      $region30: #{transe_forward_steps.1} parent=27 // pred_check_branch
        %1167 = sbr.rel (%p1165) target = $region32
      $region31: #{transe_forward_steps.1} parent=27 // pred_region
        _
      $region32: #{transe_forward_steps.1} parent=27 // pred_fallthru
        _
    $region28: #{transe_forward_steps.1} parent=5 // pred_fallthru
      _
    %p1168 = scmp.le.s32.totalorder 2, %s8
    // Predicated region
    $region33: #{transe_forward_steps.1} parent=5 // pred_check
      %p1169 = pneg %p1168
    $region34: #{transe_forward_steps.1} parent=5 // pred_check_branch
      %1171 = sbr.rel (%p1169) target = $region36
    $region35: #{transe_forward_steps.1} parent=5 // pred_region
      %s1172 = ssub.s32 %s8, 2
      // Predicated region
      $region37: #{transe_forward_steps.1} parent=35 // pred_check
        %p1173 = pneg %p84
      $region38: #{transe_forward_steps.1} parent=35 // pred_check_branch
        %1175 = sbr.rel (%p1173) target = $region40
      $region39: #{transe_forward_steps.1} parent=35 // pred_region
        %p1176 = scmp.lt.s32.totalorder %s14, 3
        %s1177 = scalar_select %p1176, %s14, 3
        %s1178 = scalar_lea.vmem %s2, %s1177
      $region40: #{transe_forward_steps.1} parent=35 // pred_fallthru
        _
    $region36: #{transe_forward_steps.1} parent=5 // pred_fallthru
      _
  $region6: #{transe_forward_steps.1} parent=0 // loop_footer
    %s12 = sadd.s32 1, %s8
  $region7: #{transe_forward_steps.1} parent=0 // loop_footer_branch
    %7 = sbr.rel target = $region3
  $region8: #{transe_forward_steps.1} parent=0 // loop_exit
    _

</llo_original>
